<compile_context>
chip_gen: v7x
topology: tpu7x:2x2x1
jax: 0.10.0
libtpu: 0.0.40
codegen_flags: <defaults>
</compile_context>

<pallas_src>
import jax
import jax.numpy as jnp
from jax.experimental import pallas as pl
from jax.experimental.pallas import tpu as pltpu


def _projector_kernel(x_ref, w1_ref, s_ref, t_ref, w2_ref, b2_ref, o_ref):
    """Fused MLP projector for one batch tile.

    x_ref : (TM, D)    w1_ref: (D, H)     s_ref/t_ref: (1, H)  folded BN scale/shift
    w2_ref: (H, P)     b2_ref: (1, P)     o_ref: (TM, P)
    """
    x = x_ref[...]
    # Linear 1 (MXU) with BN affine + bias folded in, then ReLU (VPU).
    h = jnp.dot(x, w1_ref[...], preferred_element_type=jnp.float32)
    h = jnp.maximum(h * s_ref[...] + t_ref[...], 0.0)
    # Linear 2 (MXU) + bias.
    out = jnp.dot(h, w2_ref[...], preferred_element_type=jnp.float32) + b2_ref[...]
    o_ref[...] = out.astype(o_ref.dtype)


def net_wrapper_forward(representation, w1, b1, gamma, beta, running_mean,
                        running_var, w2, b2, *, eps=1e-5, tm=8):
    """Pallas version of NetWrapper.forward(x, return_projection=True).

    representation: (B, D) flattened hidden activation (what the hook captures).
    Returns (projection, representation), matching the PyTorch module.
    """
    B, D = representation.shape
    H = w1.shape[1]
    P = w2.shape[1]
    assert B % tm == 0, "batch must be a multiple of the batch tile"

    # Fold eval-mode BatchNorm1d and the first Linear bias into scale/shift:
    #   BN(x @ W1 + b1) = (x @ W1) * scale + (b1 * scale + shift)
    inv_std = 1.0 / jnp.sqrt(running_var + eps)
    scale = (gamma * inv_std).reshape(1, H)
    shift = (beta - running_mean * gamma * inv_std).reshape(1, H)
    shift = shift + b1.reshape(1, H) * scale
    b2r = b2.reshape(1, P)

    projection = pl.pallas_call(
        _projector_kernel,
        out_shape=jax.ShapeDtypeStruct((B, P), representation.dtype),
        grid=(B // tm,),
        in_specs=[
            pl.BlockSpec((tm, D), lambda i: (i, 0)),   # representation tile
            pl.BlockSpec((D, H), lambda i: (0, 0)),    # W1 (resident)
            pl.BlockSpec((1, H), lambda i: (0, 0)),    # folded BN scale
            pl.BlockSpec((1, H), lambda i: (0, 0)),    # folded BN shift (+ b1)
            pl.BlockSpec((H, P), lambda i: (0, 0)),    # W2 (resident)
            pl.BlockSpec((1, P), lambda i: (0, 0)),    # b2
        ],
        out_specs=pl.BlockSpec((tm, P), lambda i: (i, 0)),
        compiler_params=pltpu.CompilerParams(
            dimension_semantics=("parallel",)),
    )(representation, w1, scale, shift, w2, b2r)

    return projection, representation


def reference(representation, w1, b1, gamma, beta, running_mean, running_var,
              w2, b2, eps=1e-5):
    """Pure-JAX reference of the projector MLP (eval-mode BatchNorm1d)."""
    h = representation @ w1 + b1
    h = (h - running_mean) / jnp.sqrt(running_var + eps) * gamma + beta
    h = jnp.maximum(h, 0.0)
    return h @ w2 + b2


if __name__ == "__main__":
    # Small shapes consistent with the module: representation dim D, projector
    # hidden H, projection size P (all lane-aligned), batch B (sublane-aligned).
    B, D, H, P = 16, 128, 256, 128
    eps = 1e-5

    key = jax.random.PRNGKey(0)
    k = jax.random.split(key, 9)

    representation = jax.random.normal(k[0], (B, D), jnp.float32)

    # Projector MLP parameters.
    w1 = 0.05 * jax.random.normal(k[1], (D, H), jnp.float32)
    b1 = 0.1 * jax.random.normal(k[2], (H,), jnp.float32)
    gamma = 1.0 + 0.1 * jax.random.normal(k[3], (H,), jnp.float32)
    beta = 0.1 * jax.random.normal(k[4], (H,), jnp.float32)
    running_mean = 0.1 * jax.random.normal(k[5], (H,), jnp.float32)
    running_var = 0.5 + jnp.abs(jax.random.normal(k[6], (H,), jnp.float32))
    w2 = 0.05 * jax.random.normal(k[7], (H, P), jnp.float32)
    b2 = 0.1 * jax.random.normal(k[8], (P,), jnp.float32)

    projection, rep_out = net_wrapper_forward(
        representation, w1, b1, gamma, beta, running_mean, running_var, w2, b2,
        eps=eps)
    projection = jax.block_until_ready(projection)

    ref = reference(representation, w1, b1, gamma, beta, running_mean,
                    running_var, w2, b2, eps=eps)

    assert projection.shape == (B, P), projection.shape
    assert rep_out.shape == (B, D), rep_out.shape
    max_err = float(jnp.max(jnp.abs(projection - ref)))
    assert jnp.allclose(projection, ref, atol=1e-4, rtol=1e-4), max_err
    assert jnp.array_equal(rep_out, representation)

    print("KERNEL_OK")
</pallas_src>

<mosaic_0001>
module attributes {stable_mosaic.version = 11 : i64} {
  func.func @_projector_kernel(%arg0: i32, %arg1: memref<8x128xf32, #tpu.memory_space<vmem>>, %arg2: memref<128x256xf32, #tpu.memory_space<vmem>>, %arg3: memref<1x256xf32, #tpu.memory_space<vmem>>, %arg4: memref<1x256xf32, #tpu.memory_space<vmem>>, %arg5: memref<256x128xf32, #tpu.memory_space<vmem>>, %arg6: memref<1x128xf32, #tpu.memory_space<vmem>>, %arg7: memref<8x128xf32, #tpu.memory_space<vmem>>) attributes {dimension_semantics = [#tpu.dimension_semantics<parallel>], iteration_bounds = array<i64: 2>, scalar_prefetch = 0 : i64, scratch_operands = 0 : i64, tpu.core_type = #tpu.core_type<tc>, window_params = [{transform_indices = @transform_0, window_bounds = array<i64: 8, 128>}, {pipeline_mode = #tpu.pipeline_mode<synchronous>, transform_indices = @transform_1, window_bounds = array<i64: 128, 256>}, {pipeline_mode = #tpu.pipeline_mode<synchronous>, transform_indices = @transform_2, window_bounds = array<i64: 1, 256>}, {pipeline_mode = #tpu.pipeline_mode<synchronous>, transform_indices = @transform_3, window_bounds = array<i64: 1, 256>}, {pipeline_mode = #tpu.pipeline_mode<synchronous>, transform_indices = @transform_4, window_bounds = array<i64: 256, 128>}, {pipeline_mode = #tpu.pipeline_mode<synchronous>, transform_indices = @transform_5, window_bounds = array<i64: 1, 128>}, {transform_indices = @transform_6, window_bounds = array<i64: 8, 128>}]} {
    %c0 = arith.constant 0 : index
    %c0_0 = arith.constant 0 : index
    %0 = vector.load %arg1[%c0, %c0_0] : memref<8x128xf32, #tpu.memory_space<vmem>>, vector<8x128xf32>
    %c0_1 = arith.constant 0 : index
    %c0_2 = arith.constant 0 : index
    %1 = vector.load %arg2[%c0_1, %c0_2] : memref<128x256xf32, #tpu.memory_space<vmem>>, vector<128x256xf32>
    %cst = arith.constant dense<0.000000e+00> : vector<8x256xf32>
    %2 = tpu.matmul %0, %1, %cst {dimension_numbers = #tpu.dot_dimension_numbers<[1], [0], [0], [1], [0, 0, 1, 1], [], []>} : vector<8x128xf32>, vector<128x256xf32>, vector<8x256xf32> -> vector<8x256xf32>
    %c0_3 = arith.constant 0 : index
    %c0_4 = arith.constant 0 : index
    %3 = vector.load %arg3[%c0_3, %c0_4] : memref<1x256xf32, #tpu.memory_space<vmem>>, vector<1x256xf32>
    %4 = vector.broadcast %3 : vector<1x256xf32> to vector<8x256xf32>
    %5 = arith.mulf %2, %4 : vector<8x256xf32>
    %c0_5 = arith.constant 0 : index
    %c0_6 = arith.constant 0 : index
    %6 = vector.load %arg4[%c0_5, %c0_6] : memref<1x256xf32, #tpu.memory_space<vmem>>, vector<1x256xf32>
    %7 = vector.broadcast %6 : vector<1x256xf32> to vector<8x256xf32>
    %8 = arith.addf %5, %7 : vector<8x256xf32>
    %cst_7 = arith.constant 0.000000e+00 : f32
    %9 = vector.broadcast %cst_7 : f32 to vector<8x256xf32>
    %10 = arith.maximumf %8, %9 : vector<8x256xf32>
    %c0_8 = arith.constant 0 : index
    %c0_9 = arith.constant 0 : index
    %11 = vector.load %arg5[%c0_8, %c0_9] : memref<256x128xf32, #tpu.memory_space<vmem>>, vector<256x128xf32>
    %cst_10 = arith.constant dense<0.000000e+00> : vector<8x128xf32>
    %12 = tpu.matmul %10, %11, %cst_10 {dimension_numbers = #tpu.dot_dimension_numbers<[1], [0], [0], [1], [0, 0, 1, 1], [], []>} : vector<8x256xf32>, vector<256x128xf32>, vector<8x128xf32> -> vector<8x128xf32>
    %c0_11 = arith.constant 0 : index
    %c0_12 = arith.constant 0 : index
    %13 = vector.load %arg6[%c0_11, %c0_12] : memref<1x128xf32, #tpu.memory_space<vmem>>, vector<1x128xf32>
    %14 = vector.broadcast %13 : vector<1x128xf32> to vector<8x128xf32>
    %15 = arith.addf %12, %14 : vector<8x128xf32>
    %c0_13 = arith.constant 0 : index
    %c0_14 = arith.constant 0 : index
    %16 = vector.load %arg7[%c0_13, %c0_14] : memref<8x128xf32, #tpu.memory_space<vmem>>, vector<8x128xf32>
    tpu.vector_store %arg7[%c0_13, %c0_14], %15 {strides = array<i32>} : memref<8x128xf32, #tpu.memory_space<vmem>>, vector<8x128xf32>,
    return
  }
  func.func @transform_0(%arg0: i32) -> (i32, i32) {
    %c0_i32 = arith.constant 0 : i32
    %c0_i32_0 = arith.constant 0 : i32
    return %arg0, %c0_i32 : i32, i32
  }
  func.func @transform_1(%arg0: i32) -> (i32, i32) {
    %c0_i32 = arith.constant 0 : i32
    %c0_i32_0 = arith.constant 0 : i32
    %c0_i32_1 = arith.constant 0 : i32
    return %c0_i32, %c0_i32_0 : i32, i32
  }
  func.func @transform_2(%arg0: i32) -> (i32, i32) {
    %c0_i32 = arith.constant 0 : i32
    %c0_i32_0 = arith.constant 0 : i32
    %c0_i32_1 = arith.constant 0 : i32
    return %c0_i32, %c0_i32_0 : i32, i32
  }
  func.func @transform_3(%arg0: i32) -> (i32, i32) {
    %c0_i32 = arith.constant 0 : i32
    %c0_i32_0 = arith.constant 0 : i32
    %c0_i32_1 = arith.constant 0 : i32
    return %c0_i32, %c0_i32_0 : i32, i32
  }
  func.func @transform_4(%arg0: i32) -> (i32, i32) {
    %c0_i32 = arith.constant 0 : i32
    %c0_i32_0 = arith.constant 0 : i32
    %c0_i32_1 = arith.constant 0 : i32
    return %c0_i32, %c0_i32_0 : i32, i32
  }
  func.func @transform_5(%arg0: i32) -> (i32, i32) {
    %c0_i32 = arith.constant 0 : i32
    %c0_i32_0 = arith.constant 0 : i32
    %c0_i32_1 = arith.constant 0 : i32
    return %c0_i32, %c0_i32_0 : i32, i32
  }
  func.func @transform_6(%arg0: i32) -> (i32, i32) {
    %c0_i32 = arith.constant 0 : i32
    %c0_i32_0 = arith.constant 0 : i32
    return %arg0, %c0_i32 : i32, i32
  }
}

</mosaic_0001>

<llo_original>
// kernel: tpu_custom_call.1
$region0: #{tpu_custom_call.1}
  #allocation0 [shape = 'u32[]', space=smem, size = 0x4, offset = 0x4, fixed_abs, tag = 'smem constant byte address 0x4 - core index']
  #allocation1 [shape = 'u32[144,128]{1,0:T(1,128)}', space=vmem, size = 0x12000, scoped, tag = 'internal scratch']
  %s0 = inlined_call_operand.hbm [shape: f32[16,128], index: 0, kind: input, shape index: {}]
  %s1 = inlined_call_operand.hbm [shape: f32[128,256], index: 1, kind: input, shape index: {}]
  %s2 = inlined_call_operand.vmem [shape: f32[1,256], index: 2, kind: input, shape index: {}]
  %s3 = inlined_call_operand.vmem [shape: f32[1,256], index: 3, kind: input, shape index: {}]
  %s4 = inlined_call_operand.hbm [shape: f32[256,128], index: 4, kind: input, shape index: {}]
  %s5 = inlined_call_operand.vmem [shape: f32[1,128], index: 5, kind: input, shape index: {}]
  %s6 = inlined_call_operand.hbm [shape: f32[16,128], index: 6, kind: output, shape index: {}]
  %s7 = sld [smem:[#allocation0]]
  $region69: #{tpu_custom_call.1} parent=0
    _
  %s9 = ssub.s32 1, %s7
  %s10 = scalar_select 0, %s9, %s7
  $region1: #{tpu_custom_call.1} parent=0
    #allocation2 [shape = 'u8[8192]{0}', space=vmem, size = 0x2000, scoped, tag = 'input window, operand 0']
    #allocation3 [shape = 's32[2]{0}', space=sflag, size = 0x8, scoped, tag = 'scoped memory for tpu_custom_call.1']
    #allocation4 [shape = 's32[2]{0}', space=sflag, size = 0x8, scoped, tag = 'scoped memory for tpu_custom_call.1']
    #allocation5 [shape = 'u8[131072]{0}', space=vmem, size = 0x20000, scoped, tag = 'input window, operand 1, single buffered']
    #allocation6 [shape = 's32[1]{0}', space=sflag, size = 0x4, scoped, tag = 'scoped memory for tpu_custom_call.1']
    #allocation7 [shape = 'u8[131072]{0}', space=vmem, size = 0x20000, scoped, tag = 'input window, operand 4, single buffered']
    #allocation8 [shape = 'u8[8192]{0}', space=vmem, size = 0x2000, scoped, tag = 'output window, operand 0']
    %11 = vsyncpa [#allocation3], 0
    %s12 = scalar_lea.sflag [#allocation3], 1
    %13 = vsyncpa %s12, 0
    %14 = vsyncpa [#allocation6], 0
    %15 = vsyncpa [#allocation4], 0
    %s16 = scalar_lea.sflag [#allocation4], 1
    %17 = vsyncpa %s16, 0
    loop: start=0, step=1, limit=4
    $region2: #{tpu_custom_call.1} parent=1 // loop_pre_header
      _
    $region3: #{tpu_custom_call.1} parent=1 // loop_header
      %s19 = sphi 0, %s23
      %p20 = scmp.ge.s32.totalorder %s19, 4
      %s29 = sphi 0, %s31
      %s32 = sphi 0, %s29
      %s33 = sphi 0, %s32
      %s49 = sphi 0, %s33
      %s53 = sphi 0, %s53
      %s55 = sphi 0, %s53
      %s56 = sphi 0, %s55
      %s70 = sphi 0, %s56
      %s74 = sphi 0, %s74
      %s76 = sphi 0, %s74
      %s77 = sphi 0, %s76
      %s91 = sphi 0, %s77
      %s95 = sphi 0, %s95
      %s97 = sphi 0, %s95
      %s98 = sphi 0, %s97
      %s112 = sphi 0, %s98
      %s116 = sphi 0, %s116
      %s118 = sphi 0, %s116
      %s119 = sphi 0, %s118
      %s133 = sphi 0, %s119
      %s137 = sphi 0, %s137
      %s139 = sphi 0, %s137
      %s140 = sphi 0, %s139
      %s154 = sphi 0, %s140
      %s160 = sphi 0, %s162
      %s163 = sphi 0, %s160
      %s164 = sphi 0, %s163
      %s180 = sphi 0, %s164
    $region4: #{tpu_custom_call.1} parent=1 // loop_header_branch
      %22 = sbr.rel (%p20) target = $region8
    $region5: #{tpu_custom_call.1} parent=1 // loop_body
      %s24 = ssub.s32 %s19, 1
      %s25 = ssub.s32 %s19, 2
      %s26 = sadd.s32 %s19, 1
      %s27 = ssub.s32 %s19, %s26
      %p28 = scmp.eq.s32.totalorder %s27, 0
      %s30 = sadd.s32 %s29, 1
      %s31 = scalar_select %p28, %s29, %s30
      %p34 = pneg %p28
      %p35 = scmp.eq.s32.totalorder %s19, 1
      %p36 = por %p34, %p35
      %p37 = scmp.ne.s32.totalorder %s29, %s32
      %p38 = scmp.eq.s32.totalorder %s19, 0
      %p39 = por %p37, %p38
      %p40 = scmp.ne.s32.totalorder %s29, %s32
      %p41 = scmp.eq.s32.totalorder %s24, 1
      %p42 = por %p40, %p41
      %p43 = scmp.ne.s32.totalorder %s32, %s33
      %p44 = scmp.eq.s32.totalorder %s24, 0
      %p45 = por %p43, %p44
      %p46 = scmp.ne.s32.totalorder %s32, %s33
      %p47 = scmp.eq.s32.totalorder %s25, 1
      %p48 = por %p46, %p47
      %p50 = scmp.ne.s32.totalorder %s33, %s49
      %p51 = scmp.eq.s32.totalorder %s25, 0
      %p52 = por %p50, %p51
      %s54 = sadd.s32 %s53, 1
      %p57 = scmp.eq.s32.totalorder %s19, 1
      %p58 = scmp.ne.s32.totalorder %s53, %s55
      %p59 = scmp.eq.s32.totalorder %s19, 0
      %p60 = por %p58, %p59
      %p61 = scmp.ne.s32.totalorder %s53, %s55
      %p62 = scmp.eq.s32.totalorder %s24, 1
      %p63 = por %p61, %p62
      %p64 = scmp.ne.s32.totalorder %s55, %s56
      %p65 = scmp.eq.s32.totalorder %s24, 0
      %p66 = por %p64, %p65
      %p67 = scmp.ne.s32.totalorder %s55, %s56
      %p68 = scmp.eq.s32.totalorder %s25, 1
      %p69 = por %p67, %p68
      %p71 = scmp.ne.s32.totalorder %s56, %s70
      %p72 = scmp.eq.s32.totalorder %s25, 0
      %p73 = por %p71, %p72
      %s75 = sadd.s32 %s74, 1
      %p78 = scmp.eq.s32.totalorder %s19, 1
      %p79 = scmp.ne.s32.totalorder %s74, %s76
      %p80 = scmp.eq.s32.totalorder %s19, 0
      %p81 = por %p79, %p80
      %p82 = scmp.ne.s32.totalorder %s74, %s76
      %p83 = scmp.eq.s32.totalorder %s24, 1
      %p84 = por %p82, %p83
      %p85 = scmp.ne.s32.totalorder %s76, %s77
      %p86 = scmp.eq.s32.totalorder %s24, 0
      %p87 = por %p85, %p86
      %p88 = scmp.ne.s32.totalorder %s76, %s77
      %p89 = scmp.eq.s32.totalorder %s25, 1
      %p90 = por %p88, %p89
      %p92 = scmp.ne.s32.totalorder %s77, %s91
      %p93 = scmp.eq.s32.totalorder %s25, 0
      %p94 = por %p92, %p93
      %s96 = sadd.s32 %s95, 1
      %p99 = scmp.eq.s32.totalorder %s19, 1
      %p100 = scmp.ne.s32.totalorder %s95, %s97
      %p101 = scmp.eq.s32.totalorder %s19, 0
      %p102 = por %p100, %p101
      %p103 = scmp.ne.s32.totalorder %s95, %s97
      %p104 = scmp.eq.s32.totalorder %s24, 1
      %p105 = por %p103, %p104
      %p106 = scmp.ne.s32.totalorder %s97, %s98
      %p107 = scmp.eq.s32.totalorder %s24, 0
      %p108 = por %p106, %p107
      %p109 = scmp.ne.s32.totalorder %s97, %s98
      %p110 = scmp.eq.s32.totalorder %s25, 1
      %p111 = por %p109, %p110
      %p113 = scmp.ne.s32.totalorder %s98, %s112
      %p114 = scmp.eq.s32.totalorder %s25, 0
      %p115 = por %p113, %p114
      %s117 = sadd.s32 %s116, 1
      %p120 = scmp.eq.s32.totalorder %s19, 1
      %p121 = scmp.ne.s32.totalorder %s116, %s118
      %p122 = scmp.eq.s32.totalorder %s19, 0
      %p123 = por %p121, %p122
      %p124 = scmp.ne.s32.totalorder %s116, %s118
      %p125 = scmp.eq.s32.totalorder %s24, 1
      %p126 = por %p124, %p125
      %p127 = scmp.ne.s32.totalorder %s118, %s119
      %p128 = scmp.eq.s32.totalorder %s24, 0
      %p129 = por %p127, %p128
      %p130 = scmp.ne.s32.totalorder %s118, %s119
      %p131 = scmp.eq.s32.totalorder %s25, 1
      %p132 = por %p130, %p131
      %p134 = scmp.ne.s32.totalorder %s119, %s133
      %p135 = scmp.eq.s32.totalorder %s25, 0
      %p136 = por %p134, %p135
      %s138 = sadd.s32 %s137, 1
      %p141 = scmp.eq.s32.totalorder %s19, 1
      %p142 = scmp.ne.s32.totalorder %s137, %s139
      %p143 = scmp.eq.s32.totalorder %s19, 0
      %p144 = por %p142, %p143
      %p145 = scmp.ne.s32.totalorder %s137, %s139
      %p146 = scmp.eq.s32.totalorder %s24, 1
      %p147 = por %p145, %p146
      %p148 = scmp.ne.s32.totalorder %s139, %s140
      %p149 = scmp.eq.s32.totalorder %s24, 0
      %p150 = por %p148, %p149
      %p151 = scmp.ne.s32.totalorder %s139, %s140
      %p152 = scmp.eq.s32.totalorder %s25, 1
      %p153 = por %p151, %p152
      %p155 = scmp.ne.s32.totalorder %s140, %s154
      %p156 = scmp.eq.s32.totalorder %s25, 0
      %p157 = por %p155, %p156
      %s158 = ssub.s32 %s19, %s26
      %p159 = scmp.eq.s32.totalorder %s158, 0
      %s161 = sadd.s32 %s160, 1
      %s162 = scalar_select %p159, %s160, %s161
      %p165 = pneg %p159
      %p166 = scmp.eq.s32.totalorder %s19, 1
      %p167 = por %p165, %p166
      %p168 = scmp.ne.s32.totalorder %s160, %s163
      %p169 = scmp.eq.s32.totalorder %s19, 0
      %p170 = por %p168, %p169
      %p171 = scmp.ne.s32.totalorder %s160, %s163
      %p172 = scmp.eq.s32.totalorder %s24, 1
      %p173 = por %p171, %p172
      %p174 = scmp.ne.s32.totalorder %s163, %s164
      %p175 = scmp.eq.s32.totalorder %s24, 0
      %p176 = por %p174, %p175
      %p177 = scmp.ne.s32.totalorder %s163, %s164
      %p178 = scmp.eq.s32.totalorder %s25, 1
      %p179 = por %p177, %p178
      %p181 = scmp.ne.s32.totalorder %s164, %s180
      %p182 = scmp.eq.s32.totalorder %s25, 0
      %p183 = por %p181, %p182
      %p184 = scmp.le.s32.totalorder 1, %s19
      %p185 = scmp.lt.s32.totalorder %s19, 3
      %p186 = pnand %p184, %p185
      %p187 = pneg %p186
      // Predicated region
      $region9: #{tpu_custom_call.1} parent=5 // pred_check
        _
      $region10: #{tpu_custom_call.1} parent=5 // pred_check_branch
        %189 = sbr.rel (%p186) target = $region12
      $region11: #{tpu_custom_call.1} parent=5 // pred_region
        %s190 = ssub.s32 %s19, 1
        // Predicated region
        $region13: #{tpu_custom_call.1} parent=11 // pred_check
          %p191 = pneg %p66
        $region14: #{tpu_custom_call.1} parent=11 // pred_check_branch
          %193 = sbr.rel (%p191) target = $region16
        $region15: #{tpu_custom_call.1} parent=11 // pred_region
          %s195 = ssub.s32 4096, 4096
          %196 = vsyncadd [#allocation6], %s195
          %s197 = sshll.u32 [#allocation5], 4
          %s198 = int_to_ptr.vmem [resolvable:$true] %s197
          %203 = dma.hbm_to_vmem [thread:$0]  %s1, 4096, %s198, [#allocation6], 256, 256, 16
        $region16: #{tpu_custom_call.1} parent=11 // pred_fallthru
          _
        // Predicated region
        $region17: #{tpu_custom_call.1} parent=11 // pred_check
          %p204 = pneg %p87
        $region18: #{tpu_custom_call.1} parent=11 // pred_check_branch
          %206 = sbr.rel (%p204) target = $region20
        $region19: #{tpu_custom_call.1} parent=11 // pred_region
          _
        $region20: #{tpu_custom_call.1} parent=11 // pred_fallthru
          _
        // Predicated region
        $region21: #{tpu_custom_call.1} parent=11 // pred_check
          %p207 = pneg %p108
        $region22: #{tpu_custom_call.1} parent=11 // pred_check_branch
          %209 = sbr.rel (%p207) target = $region24
        $region23: #{tpu_custom_call.1} parent=11 // pred_region
          _
        $region24: #{tpu_custom_call.1} parent=11 // pred_fallthru
          _
        // Predicated region
        $region25: #{tpu_custom_call.1} parent=11 // pred_check
          %p210 = pneg %p129
        $region26: #{tpu_custom_call.1} parent=11 // pred_check_branch
          %212 = sbr.rel (%p210) target = $region28
        $region27: #{tpu_custom_call.1} parent=11 // pred_region
          %s214 = ssub.s32 4096, 4096
          %215 = vsyncadd [#allocation6], %s214
          %s216 = sshll.u32 [#allocation7], 4
          %s217 = int_to_ptr.vmem [resolvable:$true] %s216
          %222 = dma.hbm_to_vmem [thread:$0]  %s4, 4096, %s217, [#allocation6], 128, 128, 8
        $region28: #{tpu_custom_call.1} parent=11 // pred_fallthru
          _
        // Predicated region
        $region29: #{tpu_custom_call.1} parent=11 // pred_check
          %p223 = pneg %p150
        $region30: #{tpu_custom_call.1} parent=11 // pred_check_branch
          %225 = sbr.rel (%p223) target = $region32
        $region31: #{tpu_custom_call.1} parent=11 // pred_region
          _
        $region32: #{tpu_custom_call.1} parent=11 // pred_fallthru
          _
      $region12: #{tpu_custom_call.1} parent=5 // pred_fallthru
        _
      %p226 = scmp.lt.s32.totalorder %s19, 2
      // Predicated region
      $region33: #{tpu_custom_call.1} parent=5 // pred_check
        %p227 = pneg %p226
      $region34: #{tpu_custom_call.1} parent=5 // pred_check_branch
        %229 = sbr.rel (%p227) target = $region36
      $region35: #{tpu_custom_call.1} parent=5 // pred_region
        // Predicated region
        $region37: #{tpu_custom_call.1} parent=35 // pred_check
          %p230 = pneg %p39
        $region38: #{tpu_custom_call.1} parent=35 // pred_check_branch
          %232 = sbr.rel (%p230) target = $region40
        $region39: #{tpu_custom_call.1} parent=35 // pred_region
          %s233 = sand.u32 %s29, 1
          %s234 = scalar_lea.sflag [#allocation3], %s233
          %s235 = sand.u32 %s29, 1
          %s236 = smul.addr %s235, 8
          %s237 = scalar_lea.vmem [#allocation2], %s236
          %s239 = ssub.s32 128, 128
          %240 = vsyncadd %s234, %s239
          %s241 = smul.addr %s19, 128
          %s242 = scalar_lea.hbm %s0, %s241
          %s244 = sshll.u32 %s237, 4
          %s245 = int_to_ptr.vmem [resolvable:$true] %s244
          %247 = dma.hbm_to_vmem [thread:$0]  %s242, 128, %s245, %s234
        $region40: #{tpu_custom_call.1} parent=35 // pred_fallthru
          _
      $region36: #{tpu_custom_call.1} parent=5 // pred_fallthru
        _
      %p248 = scmp.le.s32.totalorder 1, %s19
      %p249 = scmp.lt.s32.totalorder %s19, 3
      %p250 = pnand %p248, %p249
      %p251 = pneg %p250
      // Predicated region
      $region41: #{tpu_custom_call.1} parent=5 // pred_check
        _
      $region42: #{tpu_custom_call.1} parent=5 // pred_check_branch
        %253 = sbr.rel (%p250) target = $region44
      $region43: #{tpu_custom_call.1} parent=5 // pred_region
        %s254 = ssub.s32 %s19, 1
        %s255 = sand.u32 %s32, 1
        %s256 = scalar_lea.sflag [#allocation3], %s255
        %s257 = sand.u32 %s32, 1
        %s258 = smul.addr %s257, 8
        %s259 = scalar_lea.vmem [#allocation2], %s258
        // Predicated region
        $region45: #{tpu_custom_call.1} parent=43 // pred_check
          %p260 = pneg %p45
        $region46: #{tpu_custom_call.1} parent=43 // pred_check_branch
          %262 = sbr.rel (%p260) target = $region48
        $region47: #{tpu_custom_call.1} parent=43 // pred_region
          %263 = dma.done %s256, 128
        $region48: #{tpu_custom_call.1} parent=43 // pred_fallthru
          _
        // Predicated region
        $region49: #{tpu_custom_call.1} parent=43 // pred_check
          %p264 = pneg %p66
        $region50: #{tpu_custom_call.1} parent=43 // pred_check_branch
          %266 = sbr.rel (%p264) target = $region52
        $region51: #{tpu_custom_call.1} parent=43 // pred_region
          %267 = dma.done [#allocation6], 4096
        $region52: #{tpu_custom_call.1} parent=43 // pred_fallthru
          _
        // Predicated region
        $region53: #{tpu_custom_call.1} parent=43 // pred_check
          %p268 = pneg %p129
        $region54: #{tpu_custom_call.1} parent=43 // pred_check_branch
          %270 = sbr.rel (%p268) target = $region56
        $region55: #{tpu_custom_call.1} parent=43 // pred_region
          %271 = dma.done [#allocation6], 4096
        $region56: #{tpu_custom_call.1} parent=43 // pred_fallthru
          _
        %s272 = sand.u32 %s32, 1
        %s273 = scalar_lea.sflag [#allocation3], %s272
        %s274 = sand.u32 %s32, 1
        %s275 = smul.addr %s274, 8
        %s276 = scalar_lea.vmem [#allocation2], %s275
        %p277 = pneg %p45
        %p278 = pneg %p42
        %p279 = pneg %p66
        %p280 = pneg %p63
        %p281 = pneg %p87
        %p282 = pneg %p84
        %p283 = pneg %p108
        %p284 = pneg %p105
        %p285 = pneg %p129
        %p286 = pneg %p126
        %p287 = pneg %p150
        %p288 = pneg %p147
        %p289 = pneg %p176
        %p290 = pneg %p173
        %s291 = sand.u32 %s163, 1
        %s292 = scalar_lea.sflag [#allocation4], %s291
        %s293 = sand.u32 %s163, 1
        %s294 = smul.addr %s293, 8
        %s295 = scalar_lea.vmem [#allocation8], %s294
        %v296 = vld [vmem:[%s259] sm:$0xff]
        %v297 = vld [vmem:[#allocation5] sm:$0xff]
        %v298 = vld [vmem:[#allocation5 + $0x8] sm:$0xff]
        %v299 = vld [vmem:[#allocation5 + $0x10] sm:$0xff]
        %v300 = vld [vmem:[#allocation5 + $0x18] sm:$0xff]
        %v301 = vld [vmem:[#allocation5 + $0x20] sm:$0xff]
        %v302 = vld [vmem:[#allocation5 + $0x28] sm:$0xff]
        %v303 = vld [vmem:[#allocation5 + $0x30] sm:$0xff]
        %v304 = vld [vmem:[#allocation5 + $0x38] sm:$0xff]
        %v305 = vld [vmem:[#allocation5 + $0x40] sm:$0xff]
        %v306 = vld [vmem:[#allocation5 + $0x48] sm:$0xff]
        %v307 = vld [vmem:[#allocation5 + $0x50] sm:$0xff]
        %v308 = vld [vmem:[#allocation5 + $0x58] sm:$0xff]
        %v309 = vld [vmem:[#allocation5 + $0x60] sm:$0xff]
        %v310 = vld [vmem:[#allocation5 + $0x68] sm:$0xff]
        %v311 = vld [vmem:[#allocation5 + $0x70] sm:$0xff]
        %v312 = vld [vmem:[#allocation5 + $0x78] sm:$0xff]
        %v313 = vld [vmem:[#allocation5 + $0x80] sm:$0xff]
        %v314 = vld [vmem:[#allocation5 + $0x88] sm:$0xff]
        %v315 = vld [vmem:[#allocation5 + $0x90] sm:$0xff]
        %v316 = vld [vmem:[#allocation5 + $0x98] sm:$0xff]
        %v317 = vld [vmem:[#allocation5 + $0xa0] sm:$0xff]
        %v318 = vld [vmem:[#allocation5 + $0xa8] sm:$0xff]
        %v319 = vld [vmem:[#allocation5 + $0xb0] sm:$0xff]
        %v320 = vld [vmem:[#allocation5 + $0xb8] sm:$0xff]
        %v321 = vld [vmem:[#allocation5 + $0xc0] sm:$0xff]
        %v322 = vld [vmem:[#allocation5 + $0xc8] sm:$0xff]
        %v323 = vld [vmem:[#allocation5 + $0xd0] sm:$0xff]
        %v324 = vld [vmem:[#allocation5 + $0xd8] sm:$0xff]
        %v325 = vld [vmem:[#allocation5 + $0xe0] sm:$0xff]
        %v326 = vld [vmem:[#allocation5 + $0xe8] sm:$0xff]
        %v327 = vld [vmem:[#allocation5 + $0xf0] sm:$0xff]
        %v328 = vld [vmem:[#allocation5 + $0xf8] sm:$0xff]
        %329 = vmatprep.subr.mxu0 %v298
        %330 = vmatpush1.msra.mxu0 %v297
        %331 = vmatprep.subr.mxu0 %v300
        %332 = vmatpush1.msra.mxu0 %v299
        %333 = vmatprep.subr.mxu0 %v302
        %334 = vmatpush1.msra.mxu0 %v301
        %335 = vmatprep.subr.mxu0 %v304
        %336 = vmatpush1.msra.mxu0 %v303
        %337 = vmatprep.subr.mxu0 %v306
        %338 = vmatpush1.msra.mxu0 %v305
        %339 = vmatprep.subr.mxu0 %v308
        %340 = vmatpush1.msra.mxu0 %v307
        %341 = vmatprep.subr.mxu0 %v310
        %342 = vmatpush1.msra.mxu0 %v309
        %343 = vmatprep.subr.mxu0 %v312
        %344 = vmatpush1.msra.mxu0 %v311
        %345 = vmatprep.subr.mxu0 %v314
        %346 = vmatpush1.msra.mxu0 %v313
        %347 = vmatprep.subr.mxu0 %v316
        %348 = vmatpush1.msra.mxu0 %v315
        %349 = vmatprep.subr.mxu0 %v318
        %350 = vmatpush1.msra.mxu0 %v317
        %351 = vmatprep.subr.mxu0 %v320
        %352 = vmatpush1.msra.mxu0 %v319
        %353 = vmatprep.subr.mxu0 %v322
        %354 = vmatpush1.msra.mxu0 %v321
        %355 = vmatprep.subr.mxu0 %v324
        %356 = vmatpush1.msra.mxu0 %v323
        %357 = vmatprep.subr.mxu0 %v326
        %358 = vmatpush1.msra.mxu0 %v325
        %359 = vmatprep.subr.mxu0 %v328
        %360 = vmatpush1.msra.mxu0 %v327
        %361 = vmatprep.subr.mxu0 0.0
        %362 = vmatpush1.msra.mxu0 0.0
        %363 = vmatprep.subr.mxu0 0.0
        %364 = vmatpush1.msra.mxu0 0.0
        %365 = vmatprep.subr.mxu0 0.0
        %366 = vmatpush1.msra.mxu0 0.0
        %367 = vmatprep.subr.mxu0 0.0
        %368 = vmatpush1.msra.mxu0 0.0
        %369 = vmatprep.subr.mxu0 0.0
        %370 = vmatpush1.msra.mxu0 0.0
        %371 = vmatprep.subr.mxu0 0.0
        %372 = vmatpush1.msra.mxu0 0.0
        %373 = vmatprep.subr.mxu0 0.0
        %374 = vmatpush1.msra.mxu0 0.0
        %375 = vmatprep.subr.mxu0 0.0
        %376 = vmatpush1.msra.mxu0 0.0
        %377 = vmatprep.subr.mxu0 0.0
        %378 = vmatpush1.msra.mxu0 0.0
        %379 = vmatprep.subr.mxu0 0.0
        %380 = vmatpush1.msra.mxu0 0.0
        %381 = vmatprep.subr.mxu0 0.0
        %382 = vmatpush1.msra.mxu0 0.0
        %383 = vmatprep.subr.mxu0 0.0
        %384 = vmatpush1.msra.mxu0 0.0
        %385 = vmatprep.subr.mxu0 0.0
        %386 = vmatpush1.msra.mxu0 0.0
        %387 = vmatprep.subr.mxu0 0.0
        %388 = vmatpush1.msra.mxu0 0.0
        %389 = vmatprep.subr.mxu0 0.0
        %390 = vmatpush1.msra.mxu0 0.0
        %391 = vmatprep.subr.mxu0 0.0
        %392 = vmatpush1.msra.mxu0 0.0
        %393 = vmatprep.mubr.f32.mxu0 0.0
        %394 = vmatmul.mubr.f32.gmra.mrb[0].mxu0 %v296
        %v395 = vpop.f32.mrb[0].mxu0
        %v396 = vadd.f32 0.0, %v395
        %v397 = vpop.f32.mrb[0].mxu0
        %v398 = vadd.f32 0.0, %v397
        %399 = vdwg.mxu0
        %v400 = vld [vmem:[%s2] sm:$0x3]
        %v402 = vlaneseq
        %v403 = vshrl.u32 %v402, 7
        %v404 = vsub.s32 0, %v403
        %v405 = vrot.slane %v400, %v404
        %v406 = vlaneseq
        %v407 = vshrl.u32 %v406, 7
        %v408 = vsub.s32 1, %v407
        %v409 = vrot.slane %v400, %v408
        %v412 = vmul.f32 %v396, %v405
        %v413 = vmul.f32 %v398, %v409
        %v414 = vld [vmem:[%s3] sm:$0x3]
        %v416 = vlaneseq
        %v417 = vshrl.u32 %v416, 7
        %v418 = vsub.s32 0, %v417
        %v419 = vrot.slane %v414, %v418
        %v420 = vlaneseq
        %v421 = vshrl.u32 %v420, 7
        %v422 = vsub.s32 1, %v421
        %v423 = vrot.slane %v414, %v422
        %v426 = vadd.f32 %v412, %v419
        %v427 = vadd.f32 %v413, %v423
        %v428 = vmax.f32 %v426, 0.0
        %v429 = vmax.f32 %v427, 0.0
        %v430 = vld [vmem:[#allocation7] sm:$0xff]
        %v431 = vld [vmem:[#allocation7 + $0x8] sm:$0xff]
        %v432 = vld [vmem:[#allocation7 + $0x10] sm:$0xff]
        %v433 = vld [vmem:[#allocation7 + $0x18] sm:$0xff]
        %v434 = vld [vmem:[#allocation7 + $0x20] sm:$0xff]
        %v435 = vld [vmem:[#allocation7 + $0x28] sm:$0xff]
        %v436 = vld [vmem:[#allocation7 + $0x30] sm:$0xff]
        %v437 = vld [vmem:[#allocation7 + $0x38] sm:$0xff]
        %v438 = vld [vmem:[#allocation7 + $0x40] sm:$0xff]
        %v439 = vld [vmem:[#allocation7 + $0x48] sm:$0xff]
        %v440 = vld [vmem:[#allocation7 + $0x50] sm:$0xff]
        %v441 = vld [vmem:[#allocation7 + $0x58] sm:$0xff]
        %v442 = vld [vmem:[#allocation7 + $0x60] sm:$0xff]
        %v443 = vld [vmem:[#allocation7 + $0x68] sm:$0xff]
        %v444 = vld [vmem:[#allocation7 + $0x70] sm:$0xff]
        %v445 = vld [vmem:[#allocation7 + $0x78] sm:$0xff]
        %v446 = vld [vmem:[#allocation7 + $0x80] sm:$0xff]
        %v447 = vld [vmem:[#allocation7 + $0x88] sm:$0xff]
        %v448 = vld [vmem:[#allocation7 + $0x90] sm:$0xff]
        %v449 = vld [vmem:[#allocation7 + $0x98] sm:$0xff]
        %v450 = vld [vmem:[#allocation7 + $0xa0] sm:$0xff]
        %v451 = vld [vmem:[#allocation7 + $0xa8] sm:$0xff]
        %v452 = vld [vmem:[#allocation7 + $0xb0] sm:$0xff]
        %v453 = vld [vmem:[#allocation7 + $0xb8] sm:$0xff]
        %v454 = vld [vmem:[#allocation7 + $0xc0] sm:$0xff]
        %v455 = vld [vmem:[#allocation7 + $0xc8] sm:$0xff]
        %v456 = vld [vmem:[#allocation7 + $0xd0] sm:$0xff]
        %v457 = vld [vmem:[#allocation7 + $0xd8] sm:$0xff]
        %v458 = vld [vmem:[#allocation7 + $0xe0] sm:$0xff]
        %v459 = vld [vmem:[#allocation7 + $0xe8] sm:$0xff]
        %v460 = vld [vmem:[#allocation7 + $0xf0] sm:$0xff]
        %v461 = vld [vmem:[#allocation7 + $0xf8] sm:$0xff]
        %v462 = vld [vmem:[%s5] sm:$0x1]
        %v464 = vlaneseq
        %v465 = vshrl.u32 %v464, 7
        %v466 = vsub.s32 0, %v465
        %v467 = vrot.slane %v462, %v466
        %469 = vmatprep.subr.mxu0 0.0
        %470 = vmatpush1.msra.mxu0 %v430
        %471 = vmatprep.subr.mxu0 0.0
        %472 = vmatpush1.msra.mxu0 %v431
        %473 = vmatprep.subr.mxu0 0.0
        %474 = vmatpush1.msra.mxu0 %v432
        %475 = vmatprep.subr.mxu0 0.0
        %476 = vmatpush1.msra.mxu0 %v433
        %477 = vmatprep.subr.mxu0 0.0
        %478 = vmatpush1.msra.mxu0 %v434
        %479 = vmatprep.subr.mxu0 0.0
        %480 = vmatpush1.msra.mxu0 %v435
        %481 = vmatprep.subr.mxu0 0.0
        %482 = vmatpush1.msra.mxu0 %v436
        %483 = vmatprep.subr.mxu0 0.0
        %484 = vmatpush1.msra.mxu0 %v437
        %485 = vmatprep.subr.mxu0 0.0
        %486 = vmatpush1.msra.mxu0 %v438
        %487 = vmatprep.subr.mxu0 0.0
        %488 = vmatpush1.msra.mxu0 %v439
        %489 = vmatprep.subr.mxu0 0.0
        %490 = vmatpush1.msra.mxu0 %v440
        %491 = vmatprep.subr.mxu0 0.0
        %492 = vmatpush1.msra.mxu0 %v441
        %493 = vmatprep.subr.mxu0 0.0
        %494 = vmatpush1.msra.mxu0 %v442
        %495 = vmatprep.subr.mxu0 0.0
        %496 = vmatpush1.msra.mxu0 %v443
        %497 = vmatprep.subr.mxu0 0.0
        %498 = vmatpush1.msra.mxu0 %v444
        %499 = vmatprep.subr.mxu0 0.0
        %500 = vmatpush1.msra.mxu0 %v445
        %501 = vmatprep.subr.mxu0 0.0
        %502 = vmatpush1.msra.mxu0 %v446
        %503 = vmatprep.subr.mxu0 0.0
        %504 = vmatpush1.msra.mxu0 %v447
        %505 = vmatprep.subr.mxu0 0.0
        %506 = vmatpush1.msra.mxu0 %v448
        %507 = vmatprep.subr.mxu0 0.0
        %508 = vmatpush1.msra.mxu0 %v449
        %509 = vmatprep.subr.mxu0 0.0
        %510 = vmatpush1.msra.mxu0 %v450
        %511 = vmatprep.subr.mxu0 0.0
        %512 = vmatpush1.msra.mxu0 %v451
        %513 = vmatprep.subr.mxu0 0.0
        %514 = vmatpush1.msra.mxu0 %v452
        %515 = vmatprep.subr.mxu0 0.0
        %516 = vmatpush1.msra.mxu0 %v453
        %517 = vmatprep.subr.mxu0 0.0
        %518 = vmatpush1.msra.mxu0 %v454
        %519 = vmatprep.subr.mxu0 0.0
        %520 = vmatpush1.msra.mxu0 %v455
        %521 = vmatprep.subr.mxu0 0.0
        %522 = vmatpush1.msra.mxu0 %v456
        %523 = vmatprep.subr.mxu0 0.0
        %524 = vmatpush1.msra.mxu0 %v457
        %525 = vmatprep.subr.mxu0 0.0
        %526 = vmatpush1.msra.mxu0 %v458
        %527 = vmatprep.subr.mxu0 0.0
        %528 = vmatpush1.msra.mxu0 %v459
        %529 = vmatprep.subr.mxu0 0.0
        %530 = vmatpush1.msra.mxu0 %v460
        %531 = vmatprep.subr.mxu0 0.0
        %532 = vmatpush1.msra.mxu0 %v461
        %533 = vmatprep.mubr.f32.mxu0 %v429
        %534 = vmatmul.mubr.f32.gmra.mrb[0].mxu0 %v428
        %v535 = vpop.f32.mrb[0].mxu0
        %v536 = vadd.f32 %v467, %v535
        %v537 = vpop.f32.mrb[0].mxu0
        %538 = vdwg.mxu0
        %539 = vst [vmem:[%s295] sm:$0xff] %v536
        %s540 = sand.u32 %s163, 1
        %s541 = scalar_lea.sflag [#allocation4], %s540
        %s542 = sand.u32 %s163, 1
        %s543 = smul.addr %s542, 8
        %s544 = scalar_lea.vmem [#allocation8], %s543
        // Predicated region
        $region57: #{tpu_custom_call.1} parent=43 // pred_check
          %p545 = pneg %p173
        $region58: #{tpu_custom_call.1} parent=43 // pred_check_branch
          %547 = sbr.rel (%p545) target = $region60
        $region59: #{tpu_custom_call.1} parent=43 // pred_region
          %s549 = ssub.s32 128, 128
          %550 = vsyncadd %s541, %s549
          %s551 = smul.addr %s24, 128
          %s552 = scalar_lea.hbm %s6, %s551
          %s554 = sshll.u32 %s544, 4
          %s555 = int_to_ptr.vmem [resolvable:$true] %s554
          %557 = dma.vmem_to_hbm [thread:$0]  %s555, 128, %s552, %s541
        $region60: #{tpu_custom_call.1} parent=43 // pred_fallthru
          _
      $region44: #{tpu_custom_call.1} parent=5 // pred_fallthru
        _
      %p558 = scmp.le.s32.totalorder 2, %s19
      // Predicated region
      $region61: #{tpu_custom_call.1} parent=5 // pred_check
        %p559 = pneg %p558
      $region62: #{tpu_custom_call.1} parent=5 // pred_check_branch
        %561 = sbr.rel (%p559) target = $region64
      $region63: #{tpu_custom_call.1} parent=5 // pred_region
        %s562 = ssub.s32 %s19, 2
        // Predicated region
        $region65: #{tpu_custom_call.1} parent=63 // pred_check
          %p563 = pneg %p179
        $region66: #{tpu_custom_call.1} parent=63 // pred_check_branch
          %565 = sbr.rel (%p563) target = $region68
        $region67: #{tpu_custom_call.1} parent=63 // pred_region
          %s566 = sand.u32 %s164, 1
          %s567 = scalar_lea.sflag [#allocation4], %s566
          %s568 = sand.u32 %s164, 1
          %s569 = smul.addr %s568, 8
          %s570 = scalar_lea.vmem [#allocation8], %s569
          %571 = dma.done %s567, 128
        $region68: #{tpu_custom_call.1} parent=63 // pred_fallthru
          _
      $region64: #{tpu_custom_call.1} parent=5 // pred_fallthru
        _
    $region6: #{tpu_custom_call.1} parent=1 // loop_footer
      %s23 = sadd.s32 1, %s19
    $region7: #{tpu_custom_call.1} parent=1 // loop_footer_branch
      %18 = sbr.rel target = $region3
    $region8: #{tpu_custom_call.1} parent=1 // loop_exit
      _
    %572 = vsyncpa [#allocation3], 1
    %s573 = scalar_lea.sflag [#allocation3], 1
    %574 = vsyncpa %s573, 1
    %575 = vsyncpa [#allocation6], 1
    %576 = vsyncpa [#allocation4], 1
    %s577 = scalar_lea.sflag [#allocation4], 1
    %578 = vsyncpa %s577, 1

</llo_original>
